<compile_context>
chip_gen: v6e
topology: v6e:2x2x1
jax: 0.10.0
libtpu: 0.0.40
codegen_flags: <defaults>
</compile_context>

<pallas_src>
import functools

import numpy as np
import jax
import jax.numpy as jnp
from jax.experimental import pallas as pl
from jax.experimental.pallas import tpu as pltpu


# ----------------------------------------------------------------------------
# Pallas kernel
# ----------------------------------------------------------------------------
def choquet_kernel(fm_ref, x_ref, out_ref, *, S, H, D, CR, CL, n_rc, n_cc):
    """fm_ref : SMEM (var_num, H) f32 -- PReLU-activated fuzzy measure.
       x_ref  : VMEM (tn, S*D)  f32   -- row-major (S, D) per batch row.
       out_ref: VMEM (tn, H*D)  f32   -- row-major (H, D) per batch row.

    Inner chunk loop keeps sources, the subset min/max lattice and all H
    accumulators vreg-resident; each output chunk is stored exactly once.
    """
    full = (1 << S) - 1
    var_num = full

    # Hoist all FM scalar reads (SMEM) out of the hot loops.
    fm = [[fm_ref[v, h] for h in range(H)] for v in range(var_num)]

    @pl.loop(0, n_rc)
    def _rows(ri):
        r = pl.multiple_of(ri * CR, CR)

        @pl.loop(0, n_cc)
        def _cols(ci):
            c = pl.multiple_of(ci * CL, CL)

            # (CR, CL) vreg-resident source chunks (lane-aligned slices).
            xs = [x_ref[pl.ds(r, CR), pl.ds(pl.multiple_of(s * D + c, CL), CL)]
                  for s in range(S)]

            # Subset min / max lattices, bottom-up DP: one op per new subset.
            mins = [None] * (full + 1)
            maxs = [None] * (full + 1)
            for v in range(1, full + 1):
                lo = v & (-v)
                s = lo.bit_length() - 1
                rest = v ^ lo
                if rest == 0:
                    mins[v] = xs[s]
                    maxs[v] = xs[s]
                else:
                    mins[v] = jnp.minimum(mins[rest], xs[s])
                    if v != full:            # complement-max never needed for full set
                        maxs[v] = jnp.maximum(maxs[rest], xs[s])

            accs = [None] * H
            for v in range(1, full + 1):
                if v == full:
                    # Full set: coefficient is the (possibly negative) global
                    # min, matching the appended-zero diff in the torch forward.
                    w = mins[v]
                else:
                    w = jnp.maximum(mins[v] - maxs[full ^ v], 0.0)
                frow = fm[v - 1]
                for h in range(H):
                    term = w * frow[h]
                    accs[h] = term if accs[h] is None else accs[h] + term

            for h in range(H):
                out_ref[pl.ds(r, CR),
                        pl.ds(pl.multiple_of(h * D + c, CL), CL)] = accs[h]


# ----------------------------------------------------------------------------
# Wrapper
# ----------------------------------------------------------------------------
def _vmem_capacity_bytes():
    try:
        return int(pltpu.get_tpu_info().vmem_capacity_bytes)
    except Exception:
        return 64 * 1024 * 1024   # conservative fallback (v7x per-TC VMEM)


def choquet_forward(x, fm_act, *, tn=None):
    """x: (N, S, D) f32, fm_act: (2**S - 1, heads) f32 (PReLU already applied).
    Returns (N, D, heads), or (N, D) when heads == 1 (matches torch squeeze)."""
    N, S, D = x.shape
    var_num, H = fm_act.shape
    assert var_num == 2 ** S - 1
    assert S <= 5, "fully-unrolled subset lattice: keep S small (compile/vregs)"

    CL = 128
    Dp = ((D + CL - 1) // CL) * CL

    # Chunk rows so xs + lattice + H accumulators stay within the vreg file.
    full = 1 << S
    arrays_live = S + (full - 1) + (full - 2) + H + 3
    chunk_vregs = max(1, min(4, 48 // max(arrays_live, 1)))
    CR = 8 * chunk_vregs                         # 8, 16 or 32 rows per chunk

    # Generation-aware VMEM budget (v5e/v6e: 128 MiB; v7x: 64 MiB per TC).
    vmem_cap = _vmem_capacity_bytes()
    vmem_limit = int(min(vmem_cap * 5 // 8, 64 * 1024 * 1024))
    block_budget = vmem_limit // 2
    per_row = 2 * (S + H) * Dp * 4               # double-buffered in + out blocks

    if tn is None:
        tn = max(CR, min(512, block_budget // per_row))
    tn = max(CR, (tn // CR) * CR)
    tn = min(tn, ((N + CR - 1) // CR) * CR)      # never bigger than the batch
    # v7x-class parts (small VMEM, 2 TensorCores): keep >=2 grid steps.
    if vmem_cap <= 96 * 1024 * 1024 and -(-N // tn) < 2 and N > 2 * CR:
        tn = max(CR, ((N // 2) // CR) * CR)

    # Lane padding only; the ragged last batch block is masked by Pallas.
    xp = x if Dp == D else jnp.pad(x, ((0, 0), (0, 0), (0, Dp - D)))
    x2 = xp.reshape(N, S * Dp)                   # free row-major reshape

    grid = (pl.cdiv(N, tn),)
    n_rc, n_cc = tn // CR, Dp // CL

    kernel = functools.partial(choquet_kernel, S=S, H=H, D=Dp,
                               CR=CR, CL=CL, n_rc=n_rc, n_cc=n_cc)

    ops_per_elem = (2 * (full - S - 1)           # min/max lattice
                    + 2 * (var_num - 1) + 1      # diffs + clamps
                    + 2 * var_num * H)           # multiply-accumulate
    cost = pl.CostEstimate(flops=N * Dp * ops_per_elem,
                           transcendentals=0,
                           bytes_accessed=(S + H) * N * Dp * 4)

    out2 = pl.pallas_call(
        kernel,
        out_shape=jax.ShapeDtypeStruct((N, H * Dp), jnp.float32),
        grid=grid,
        in_specs=[
            pl.BlockSpec(memory_space=pltpu.MemorySpace.SMEM),   # FM table
            pl.BlockSpec((tn, S * Dp), lambda i: (i, 0)),        # x rows
        ],
        out_specs=pl.BlockSpec((tn, H * Dp), lambda i: (i, 0)),
        compiler_params=pltpu.CompilerParams(
            dimension_semantics=("parallel",),
            vmem_limit_bytes=vmem_limit,
        ),
        cost_estimate=cost,
    )(fm_act, x2)

    out = out2.reshape(N, H, Dp)[:, :, :D]       # free reshape (+ lane slice)
    # Torch return layout (N, D, H); kept out of the kernel on purpose
    # (H ~ 4 on the lane axis would force masked partial stores in-kernel).
    out = jnp.transpose(out, (0, 2, 1))
    if H == 1:
        out = out[..., 0]
    return out


# ----------------------------------------------------------------------------
# Parameter construction (mirrors Choquet_Integral.__init__ deterministically)
# ----------------------------------------------------------------------------
def _source_index(S):
    idxs = []
    for bcode in range(1, 2 ** S):
        ones = [j for j, c in enumerate(bin(bcode)[2:][::-1]) if c == '1']
        idxs.append([bcode - 1 - 2 ** i for i in ones])
    return idxs


def init_fm(S, heads, key):
    var_num = 2 ** S - 1
    fm = np.ones((var_num, heads), dtype=np.float32) / S
    # standardize() (sequential, in-place, as in the torch module)
    for idx, sub in enumerate(_source_index(S)):
        if len(sub) > 1:
            maxval = fm[sub, :].max(axis=0)
            fm[idx, :] = np.where(fm[idx, :] <= maxval, fm[idx, :] + maxval, fm[idx, :])
    noise = np.asarray(jax.random.normal(key, (var_num, heads), dtype=jnp.float32)) + 0.05
    return jnp.asarray(fm + noise, dtype=jnp.float32)


def prelu(x, a=0.25):
    # torch.nn.PReLU default: single learnable slope init to 0.25
    return jnp.where(x >= 0, x, a * x)


# ----------------------------------------------------------------------------
# Pure-JAX reference (same math as torch forward) for a correctness check
# ----------------------------------------------------------------------------
def ref_forward(x, fm_act):
    N, S, D = x.shape
    order = jnp.argsort(-x, axis=1)                              # descending
    x_sorted = jnp.take_along_axis(x, order, axis=1)
    x_ext = jnp.concatenate([x_sorted, jnp.zeros((N, 1, D), x.dtype)], axis=1)
    diffs = x_ext[:, :-1, :] - x_ext[:, 1:, :]                   # (N, S, D)
    codes = jnp.cumsum(jnp.left_shift(jnp.int32(1), order), axis=1) - 1
    fm_g = fm_act[codes]                                         # (N, S, D, H)
    out = (fm_g * diffs[..., None]).sum(axis=1)                  # (N, D, H)
    if fm_act.shape[1] == 1:
        out = out[..., 0]
    return out


# ----------------------------------------------------------------------------
if __name__ == "__main__":
    heads = 4
    neighbor_node_nums = 3          # S
    batch = 16                      # N
    feat = 128                      # D

    key = jax.random.PRNGKey(0)
    kx, kfm = jax.random.split(key)

    x = jax.random.normal(kx, (batch, neighbor_node_nums, feat), dtype=jnp.float32)
    fm = init_fm(neighbor_node_nums, heads, kfm)   # (2**S - 1, heads)
    fm_act = prelu(fm)                             # self.act(self.FM)
    # TODO(synk): dropout arg of __init__ is unused in forward(); nothing to port.

    out = choquet_forward(x, fm_act)
    out = jax.block_until_ready(out)

    ref = ref_forward(x, fm_act)
    assert out.shape == (batch, feat, heads)
    np.testing.assert_allclose(np.asarray(out), np.asarray(ref), rtol=1e-5, atol=1e-5)

    print("KERNEL_OK")
</pallas_src>

<mosaic_0001>
module attributes {stable_mosaic.version = 11 : i64} {
  func.func @choquet_kernel(%arg0: i32, %arg1: memref<7x4xf32, #tpu.memory_space<smem>>, %arg2: memref<16x384xf32, #tpu.memory_space<vmem>>, %arg3: memref<16x512xf32, #tpu.memory_space<vmem>>) attributes {dimension_semantics = [#tpu.dimension_semantics<parallel>], iteration_bounds = array<i64: 1>, scalar_prefetch = 0 : i64, scratch_operands = 0 : i64, tpu.core_type = #tpu.core_type<tc>, window_params = [{transform_indices = @transform_0, window_bounds = array<i64: 7, 4>}, {transform_indices = @transform_1, window_bounds = array<i64: 16, 384>}, {transform_indices = @transform_2, window_bounds = array<i64: 16, 512>}]} {
    %c0 = arith.constant 0 : index
    %c0_0 = arith.constant 0 : index
    %0 = memref.load %arg1[%c0, %c0_0] : memref<7x4xf32, #tpu.memory_space<smem>>
    %c0_1 = arith.constant 0 : index
    %c1 = arith.constant 1 : index
    %1 = memref.load %arg1[%c0_1, %c1] : memref<7x4xf32, #tpu.memory_space<smem>>
    %c0_2 = arith.constant 0 : index
    %c2 = arith.constant 2 : index
    %2 = memref.load %arg1[%c0_2, %c2] : memref<7x4xf32, #tpu.memory_space<smem>>
    %c0_3 = arith.constant 0 : index
    %c3 = arith.constant 3 : index
    %3 = memref.load %arg1[%c0_3, %c3] : memref<7x4xf32, #tpu.memory_space<smem>>
    %c1_4 = arith.constant 1 : index
    %c0_5 = arith.constant 0 : index
    %4 = memref.load %arg1[%c1_4, %c0_5] : memref<7x4xf32, #tpu.memory_space<smem>>
    %c1_6 = arith.constant 1 : index
    %c1_7 = arith.constant 1 : index
    %5 = memref.load %arg1[%c1_6, %c1_7] : memref<7x4xf32, #tpu.memory_space<smem>>
    %c1_8 = arith.constant 1 : index
    %c2_9 = arith.constant 2 : index
    %6 = memref.load %arg1[%c1_8, %c2_9] : memref<7x4xf32, #tpu.memory_space<smem>>
    %c1_10 = arith.constant 1 : index
    %c3_11 = arith.constant 3 : index
    %7 = memref.load %arg1[%c1_10, %c3_11] : memref<7x4xf32, #tpu.memory_space<smem>>
    %c2_12 = arith.constant 2 : index
    %c0_13 = arith.constant 0 : index
    %8 = memref.load %arg1[%c2_12, %c0_13] : memref<7x4xf32, #tpu.memory_space<smem>>
    %c2_14 = arith.constant 2 : index
    %c1_15 = arith.constant 1 : index
    %9 = memref.load %arg1[%c2_14, %c1_15] : memref<7x4xf32, #tpu.memory_space<smem>>
    %c2_16 = arith.constant 2 : index
    %c2_17 = arith.constant 2 : index
    %10 = memref.load %arg1[%c2_16, %c2_17] : memref<7x4xf32, #tpu.memory_space<smem>>
    %c2_18 = arith.constant 2 : index
    %c3_19 = arith.constant 3 : index
    %11 = memref.load %arg1[%c2_18, %c3_19] : memref<7x4xf32, #tpu.memory_space<smem>>
    %c3_20 = arith.constant 3 : index
    %c0_21 = arith.constant 0 : index
    %12 = memref.load %arg1[%c3_20, %c0_21] : memref<7x4xf32, #tpu.memory_space<smem>>
    %c3_22 = arith.constant 3 : index
    %c1_23 = arith.constant 1 : index
    %13 = memref.load %arg1[%c3_22, %c1_23] : memref<7x4xf32, #tpu.memory_space<smem>>
    %c3_24 = arith.constant 3 : index
    %c2_25 = arith.constant 2 : index
    %14 = memref.load %arg1[%c3_24, %c2_25] : memref<7x4xf32, #tpu.memory_space<smem>>
    %c3_26 = arith.constant 3 : index
    %c3_27 = arith.constant 3 : index
    %15 = memref.load %arg1[%c3_26, %c3_27] : memref<7x4xf32, #tpu.memory_space<smem>>
    %c4 = arith.constant 4 : index
    %c0_28 = arith.constant 0 : index
    %16 = memref.load %arg1[%c4, %c0_28] : memref<7x4xf32, #tpu.memory_space<smem>>
    %c4_29 = arith.constant 4 : index
    %c1_30 = arith.constant 1 : index
    %17 = memref.load %arg1[%c4_29, %c1_30] : memref<7x4xf32, #tpu.memory_space<smem>>
    %c4_31 = arith.constant 4 : index
    %c2_32 = arith.constant 2 : index
    %18 = memref.load %arg1[%c4_31, %c2_32] : memref<7x4xf32, #tpu.memory_space<smem>>
    %c4_33 = arith.constant 4 : index
    %c3_34 = arith.constant 3 : index
    %19 = memref.load %arg1[%c4_33, %c3_34] : memref<7x4xf32, #tpu.memory_space<smem>>
    %c5 = arith.constant 5 : index
    %c0_35 = arith.constant 0 : index
    %20 = memref.load %arg1[%c5, %c0_35] : memref<7x4xf32, #tpu.memory_space<smem>>
    %c5_36 = arith.constant 5 : index
    %c1_37 = arith.constant 1 : index
    %21 = memref.load %arg1[%c5_36, %c1_37] : memref<7x4xf32, #tpu.memory_space<smem>>
    %c5_38 = arith.constant 5 : index
    %c2_39 = arith.constant 2 : index
    %22 = memref.load %arg1[%c5_38, %c2_39] : memref<7x4xf32, #tpu.memory_space<smem>>
    %c5_40 = arith.constant 5 : index
    %c3_41 = arith.constant 3 : index
    %23 = memref.load %arg1[%c5_40, %c3_41] : memref<7x4xf32, #tpu.memory_space<smem>>
    %c6 = arith.constant 6 : index
    %c0_42 = arith.constant 0 : index
    %24 = memref.load %arg1[%c6, %c0_42] : memref<7x4xf32, #tpu.memory_space<smem>>
    %c6_43 = arith.constant 6 : index
    %c1_44 = arith.constant 1 : index
    %25 = memref.load %arg1[%c6_43, %c1_44] : memref<7x4xf32, #tpu.memory_space<smem>>
    %c6_45 = arith.constant 6 : index
    %c2_46 = arith.constant 2 : index
    %26 = memref.load %arg1[%c6_45, %c2_46] : memref<7x4xf32, #tpu.memory_space<smem>>
    %c6_47 = arith.constant 6 : index
    %c3_48 = arith.constant 3 : index
    %27 = memref.load %arg1[%c6_47, %c3_48] : memref<7x4xf32, #tpu.memory_space<smem>>
    %c0_i32 = arith.constant 0 : i32
    %c1_i32 = arith.constant 1 : i32
    %28 = arith.muli %c0_i32, %c1_i32 : i32
    %c0_i32_49 = arith.constant 0 : i32
    %29 = arith.addi %c0_i32_49, %28 : i32
    %c16_i32 = arith.constant 16 : i32
    %30 = arith.muli %29, %c16_i32 : i32
    %31 = tpu.assume_multiple %30, 16 : i32
    %c0_i32_50 = arith.constant 0 : i32
    %c1_i32_51 = arith.constant 1 : i32
    %32 = arith.muli %c0_i32_50, %c1_i32_51 : i32
    %c0_i32_52 = arith.constant 0 : i32
    %33 = arith.addi %c0_i32_52, %32 : i32
    %c128_i32 = arith.constant 128 : i32
    %34 = arith.muli %33, %c128_i32 : i32
    %35 = tpu.assume_multiple %34, 128 : i32
    %c0_i32_53 = arith.constant 0 : i32
    %36 = arith.addi %c0_i32_53, %35 : i32
    %37 = tpu.assume_multiple %36, 128 : i32
    %38 = arith.index_cast %31 : i32 to index
    %39 = arith.index_cast %37 : i32 to index
    %40 = vector.load %arg2[%38, %39] : memref<16x384xf32, #tpu.memory_space<vmem>>, vector<16x128xf32>
    %c128_i32_54 = arith.constant 128 : i32
    %41 = arith.addi %c128_i32_54, %35 : i32
    %42 = tpu.assume_multiple %41, 128 : i32
    %43 = arith.index_cast %31 : i32 to index
    %44 = arith.index_cast %42 : i32 to index
    %45 = vector.load %arg2[%43, %44] : memref<16x384xf32, #tpu.memory_space<vmem>>, vector<16x128xf32>
    %c256_i32 = arith.constant 256 : i32
    %46 = arith.addi %c256_i32, %35 : i32
    %47 = tpu.assume_multiple %46, 128 : i32
    %48 = arith.index_cast %31 : i32 to index
    %49 = arith.index_cast %47 : i32 to index
    %50 = vector.load %arg2[%48, %49] : memref<16x384xf32, #tpu.memory_space<vmem>>, vector<16x128xf32>
    %51 = arith.minimumf %45, %40 : vector<16x128xf32>
    %52 = arith.maximumf %45, %40 : vector<16x128xf32>
    %53 = arith.minimumf %50, %40 : vector<16x128xf32>
    %54 = arith.maximumf %50, %40 : vector<16x128xf32>
    %55 = arith.minimumf %50, %45 : vector<16x128xf32>
    %56 = arith.maximumf %50, %45 : vector<16x128xf32>
    %57 = arith.minimumf %55, %40 : vector<16x128xf32>
    %58 = arith.subf %40, %56 : vector<16x128xf32>
    %cst = arith.constant 0.000000e+00 : f32
    %59 = vector.broadcast %cst : f32 to vector<16x128xf32>
    %60 = arith.maximumf %58, %59 : vector<16x128xf32>
    %61 = vector.broadcast %0 : f32 to vector<16x128xf32>
    %62 = arith.mulf %60, %61 : vector<16x128xf32>
    %63 = vector.broadcast %1 : f32 to vector<16x128xf32>
    %64 = arith.mulf %60, %63 : vector<16x128xf32>
    %65 = vector.broadcast %2 : f32 to vector<16x128xf32>
    %66 = arith.mulf %60, %65 : vector<16x128xf32>
    %67 = vector.broadcast %3 : f32 to vector<16x128xf32>
    %68 = arith.mulf %60, %67 : vector<16x128xf32>
    %69 = arith.subf %45, %54 : vector<16x128xf32>
    %cst_55 = arith.constant 0.000000e+00 : f32
    %70 = vector.broadcast %cst_55 : f32 to vector<16x128xf32>
    %71 = arith.maximumf %69, %70 : vector<16x128xf32>
    %72 = vector.broadcast %4 : f32 to vector<16x128xf32>
    %73 = arith.mulf %71, %72 : vector<16x128xf32>
    %74 = arith.addf %62, %73 : vector<16x128xf32>
    %75 = vector.broadcast %5 : f32 to vector<16x128xf32>
    %76 = arith.mulf %71, %75 : vector<16x128xf32>
    %77 = arith.addf %64, %76 : vector<16x128xf32>
    %78 = vector.broadcast %6 : f32 to vector<16x128xf32>
    %79 = arith.mulf %71, %78 : vector<16x128xf32>
    %80 = arith.addf %66, %79 : vector<16x128xf32>
    %81 = vector.broadcast %7 : f32 to vector<16x128xf32>
    %82 = arith.mulf %71, %81 : vector<16x128xf32>
    %83 = arith.addf %68, %82 : vector<16x128xf32>
    %84 = arith.subf %51, %50 : vector<16x128xf32>
    %cst_56 = arith.constant 0.000000e+00 : f32
    %85 = vector.broadcast %cst_56 : f32 to vector<16x128xf32>
    %86 = arith.maximumf %84, %85 : vector<16x128xf32>
    %87 = vector.broadcast %8 : f32 to vector<16x128xf32>
    %88 = arith.mulf %86, %87 : vector<16x128xf32>
    %89 = arith.addf %74, %88 : vector<16x128xf32>
    %90 = vector.broadcast %9 : f32 to vector<16x128xf32>
    %91 = arith.mulf %86, %90 : vector<16x128xf32>
    %92 = arith.addf %77, %91 : vector<16x128xf32>
    %93 = vector.broadcast %10 : f32 to vector<16x128xf32>
    %94 = arith.mulf %86, %93 : vector<16x128xf32>
    %95 = arith.addf %80, %94 : vector<16x128xf32>
    %96 = vector.broadcast %11 : f32 to vector<16x128xf32>
    %97 = arith.mulf %86, %96 : vector<16x128xf32>
    %98 = arith.addf %83, %97 : vector<16x128xf32>
    %99 = arith.subf %50, %52 : vector<16x128xf32>
    %cst_57 = arith.constant 0.000000e+00 : f32
    %100 = vector.broadcast %cst_57 : f32 to vector<16x128xf32>
    %101 = arith.maximumf %99, %100 : vector<16x128xf32>
    %102 = vector.broadcast %12 : f32 to vector<16x128xf32>
    %103 = arith.mulf %101, %102 : vector<16x128xf32>
    %104 = arith.addf %89, %103 : vector<16x128xf32>
    %105 = vector.broadcast %13 : f32 to vector<16x128xf32>
    %106 = arith.mulf %101, %105 : vector<16x128xf32>
    %107 = arith.addf %92, %106 : vector<16x128xf32>
    %108 = vector.broadcast %14 : f32 to vector<16x128xf32>
    %109 = arith.mulf %101, %108 : vector<16x128xf32>
    %110 = arith.addf %95, %109 : vector<16x128xf32>
    %111 = vector.broadcast %15 : f32 to vector<16x128xf32>
    %112 = arith.mulf %101, %111 : vector<16x128xf32>
    %113 = arith.addf %98, %112 : vector<16x128xf32>
    %114 = arith.subf %53, %45 : vector<16x128xf32>
    %cst_58 = arith.constant 0.000000e+00 : f32
    %115 = vector.broadcast %cst_58 : f32 to vector<16x128xf32>
    %116 = arith.maximumf %114, %115 : vector<16x128xf32>
    %117 = vector.broadcast %16 : f32 to vector<16x128xf32>
    %118 = arith.mulf %116, %117 : vector<16x128xf32>
    %119 = arith.addf %104, %118 : vector<16x128xf32>
    %120 = vector.broadcast %17 : f32 to vector<16x128xf32>
    %121 = arith.mulf %116, %120 : vector<16x128xf32>
    %122 = arith.addf %107, %121 : vector<16x128xf32>
    %123 = vector.broadcast %18 : f32 to vector<16x128xf32>
    %124 = arith.mulf %116, %123 : vector<16x128xf32>
    %125 = arith.addf %110, %124 : vector<16x128xf32>
    %126 = vector.broadcast %19 : f32 to vector<16x128xf32>
    %127 = arith.mulf %116, %126 : vector<16x128xf32>
    %128 = arith.addf %113, %127 : vector<16x128xf32>
    %129 = arith.subf %55, %40 : vector<16x128xf32>
    %cst_59 = arith.constant 0.000000e+00 : f32
    %130 = vector.broadcast %cst_59 : f32 to vector<16x128xf32>
    %131 = arith.maximumf %129, %130 : vector<16x128xf32>
    %132 = vector.broadcast %20 : f32 to vector<16x128xf32>
    %133 = arith.mulf %131, %132 : vector<16x128xf32>
    %134 = arith.addf %119, %133 : vector<16x128xf32>
    %135 = vector.broadcast %21 : f32 to vector<16x128xf32>
    %136 = arith.mulf %131, %135 : vector<16x128xf32>
    %137 = arith.addf %122, %136 : vector<16x128xf32>
    %138 = vector.broadcast %22 : f32 to vector<16x128xf32>
    %139 = arith.mulf %131, %138 : vector<16x128xf32>
    %140 = arith.addf %125, %139 : vector<16x128xf32>
    %141 = vector.broadcast %23 : f32 to vector<16x128xf32>
    %142 = arith.mulf %131, %141 : vector<16x128xf32>
    %143 = arith.addf %128, %142 : vector<16x128xf32>
    %144 = vector.broadcast %24 : f32 to vector<16x128xf32>
    %145 = arith.mulf %57, %144 : vector<16x128xf32>
    %146 = arith.addf %134, %145 : vector<16x128xf32>
    %147 = vector.broadcast %25 : f32 to vector<16x128xf32>
    %148 = arith.mulf %57, %147 : vector<16x128xf32>
    %149 = arith.addf %137, %148 : vector<16x128xf32>
    %150 = vector.broadcast %26 : f32 to vector<16x128xf32>
    %151 = arith.mulf %57, %150 : vector<16x128xf32>
    %152 = arith.addf %140, %151 : vector<16x128xf32>
    %153 = vector.broadcast %27 : f32 to vector<16x128xf32>
    %154 = arith.mulf %57, %153 : vector<16x128xf32>
    %155 = arith.addf %143, %154 : vector<16x128xf32>
    %c0_i32_60 = arith.constant 0 : i32
    %156 = arith.addi %c0_i32_60, %35 : i32
    %157 = tpu.assume_multiple %156, 128 : i32
    %158 = arith.index_cast %31 : i32 to index
    %159 = arith.index_cast %157 : i32 to index
    %160 = vector.load %arg3[%158, %159] : memref<16x512xf32, #tpu.memory_space<vmem>>, vector<16x128xf32>
    tpu.vector_store %arg3[%158, %159], %146 {strides = array<i32>} : memref<16x512xf32, #tpu.memory_space<vmem>>, vector<16x128xf32>,
    %c128_i32_61 = arith.constant 128 : i32
    %161 = arith.addi %c128_i32_61, %35 : i32
    %162 = tpu.assume_multiple %161, 128 : i32
    %163 = arith.index_cast %31 : i32 to index
    %164 = arith.index_cast %162 : i32 to index
    %165 = vector.load %arg3[%163, %164] : memref<16x512xf32, #tpu.memory_space<vmem>>, vector<16x128xf32>
    tpu.vector_store %arg3[%163, %164], %149 {strides = array<i32>} : memref<16x512xf32, #tpu.memory_space<vmem>>, vector<16x128xf32>,
    %c256_i32_62 = arith.constant 256 : i32
    %166 = arith.addi %c256_i32_62, %35 : i32
    %167 = tpu.assume_multiple %166, 128 : i32
    %168 = arith.index_cast %31 : i32 to index
    %169 = arith.index_cast %167 : i32 to index
    %170 = vector.load %arg3[%168, %169] : memref<16x512xf32, #tpu.memory_space<vmem>>, vector<16x128xf32>
    tpu.vector_store %arg3[%168, %169], %152 {strides = array<i32>} : memref<16x512xf32, #tpu.memory_space<vmem>>, vector<16x128xf32>,
    %c384_i32 = arith.constant 384 : i32
    %171 = arith.addi %c384_i32, %35 : i32
    %172 = tpu.assume_multiple %171, 128 : i32
    %173 = arith.index_cast %31 : i32 to index
    %174 = arith.index_cast %172 : i32 to index
    %175 = vector.load %arg3[%173, %174] : memref<16x512xf32, #tpu.memory_space<vmem>>, vector<16x128xf32>
    tpu.vector_store %arg3[%173, %174], %155 {strides = array<i32>} : memref<16x512xf32, #tpu.memory_space<vmem>>, vector<16x128xf32>,
    %c1_i32_63 = arith.constant 1 : i32
    %c1_i32_64 = arith.constant 1 : i32
    return
  }
  func.func @transform_0(%arg0: i32) -> (i32, i32) {
    %c0_i32 = arith.constant 0 : i32
    %c0_i32_0 = arith.constant 0 : i32
    %c0_i32_1 = arith.constant 0 : i32
    return %c0_i32, %c0_i32_0 : i32, i32
  }
  func.func @transform_1(%arg0: i32) -> (i32, i32) {
    %c0_i32 = arith.constant 0 : i32
    %c0_i32_0 = arith.constant 0 : i32
    return %arg0, %c0_i32 : i32, i32
  }
  func.func @transform_2(%arg0: i32) -> (i32, i32) {
    %c0_i32 = arith.constant 0 : i32
    %c0_i32_0 = arith.constant 0 : i32
    return %arg0, %c0_i32 : i32, i32
  }
}

</mosaic_0001>

<llo_original>
// kernel: tpu_custom_call.1
$region0: #{tpu_custom_call.1}
  #allocation0 [shape = 'u32[]', space=smem, size = 0x4, offset = 0x4, fixed_abs, tag = 'smem constant byte address 0x4 - core index']
  #allocation1 [shape = 'u32[144,128]{1,0:T(1,128)}', space=vmem, size = 0x12000, scoped, tag = 'internal scratch']
  %s0 = inlined_call_operand.vmem [shape: f32[7,4], index: 0, kind: input, shape index: {}]
  %s1 = inlined_call_operand.hbm [shape: f32[16,384], index: 1, kind: input, shape index: {}]
  %s2 = inlined_call_operand.hbm [shape: f32[16,512], index: 2, kind: output, shape index: {}]
  %s3 = sld [smem:[#allocation0]]
  $region26: #{tpu_custom_call.1} parent=0
    _
  %s5 = ssub.s32 1, %s3
  %s6 = scalar_select 0, %s5, %s3
  $region1: #{tpu_custom_call.1} parent=0
    #allocation2 [shape = 'u8[4096]{0}', space=smem, size = 0x1000, scoped, tag = 'input window, operand 0, single buffered']
    #allocation3 [shape = 's32[1]{0}', space=sflag, size = 0x4, scoped, tag = 'scoped memory for tpu_custom_call.1']
    #allocation4 [shape = 's32[1]{0}', space=sflag, size = 0x4, scoped, tag = 'scoped memory for tpu_custom_call.1']
    #allocation5 [shape = 's32[1]{0}', space=sflag, size = 0x4, scoped, tag = 'scoped memory for tpu_custom_call.1']
    #allocation6 [shape = 'u8[24576]{0}', space=vmem, size = 0x6000, scoped, tag = 'input window, operand 1, single buffered']
    #allocation7 [shape = 'u8[32768]{0}', space=vmem, size = 0x8000, scoped, tag = 'output window, operand 0, single buffered']
    %7 = vsyncpa [#allocation5], 0
    %8 = vsyncpa [#allocation3], 0
    %9 = vsyncpa [#allocation4], 0
    // Predicated region
    $region2: #{tpu_custom_call.1} parent=1 // pred_check
      _
    $region3: #{tpu_custom_call.1} parent=1 // pred_check_branch
      %11 = sbr.rel (0) target = $region5
    $region4: #{tpu_custom_call.1} parent=1 // pred_region
      %s13 = ssub.s32 128, 128
      %14 = vsyncadd [#allocation5], %s13
      %s16 = sshll.u32 %s0, 4
      %s17 = int_to_ptr.vmem [resolvable:$true] %s16
      %19 = dma.vmem_to_smem %s17, 128, [#allocation2], [#allocation5]
    $region5: #{tpu_custom_call.1} parent=1 // pred_fallthru
      _
    // Predicated region
    $region6: #{tpu_custom_call.1} parent=1 // pred_check
      _
    $region7: #{tpu_custom_call.1} parent=1 // pred_check_branch
      %21 = sbr.rel (0) target = $region9
    $region8: #{tpu_custom_call.1} parent=1 // pred_region
      %s23 = ssub.s32 768, 768
      %24 = vsyncadd [#allocation3], %s23
      %s25 = sshll.u32 [#allocation6], 4
      %s26 = int_to_ptr.vmem [resolvable:$true] %s25
      %31 = dma.hbm_to_vmem [thread:$0]  %s1, 768, %s26, [#allocation3], 384, 384, 24
    $region9: #{tpu_custom_call.1} parent=1 // pred_fallthru
      _
    // Predicated region
    $region10: #{tpu_custom_call.1} parent=1 // pred_check
      _
    $region11: #{tpu_custom_call.1} parent=1 // pred_check_branch
      %33 = sbr.rel (0) target = $region13
    $region12: #{tpu_custom_call.1} parent=1 // pred_region
      %34 = dma.done [#allocation5], 128
    $region13: #{tpu_custom_call.1} parent=1 // pred_fallthru
      _
    // Predicated region
    $region14: #{tpu_custom_call.1} parent=1 // pred_check
      _
    $region15: #{tpu_custom_call.1} parent=1 // pred_check_branch
      %36 = sbr.rel (0) target = $region17
    $region16: #{tpu_custom_call.1} parent=1 // pred_region
      %37 = dma.done [#allocation3], 768
    $region17: #{tpu_custom_call.1} parent=1 // pred_fallthru
      _
    %38 = sfence
    %s39 = sld [smem:[#allocation2]]
    %s40 = sld [smem:[#allocation2 + $0x1]]
    %s41 = sld [smem:[#allocation2 + $0x2]]
    %s42 = sld [smem:[#allocation2 + $0x3]]
    %s43 = sld [smem:[#allocation2 + $0x80]]
    %s44 = sld [smem:[#allocation2 + $0x81]]
    %s45 = sld [smem:[#allocation2 + $0x82]]
    %s46 = sld [smem:[#allocation2 + $0x83]]
    %s47 = sld [smem:[#allocation2 + $0x100]]
    %s48 = sld [smem:[#allocation2 + $0x101]]
    %s49 = sld [smem:[#allocation2 + $0x102]]
    %s50 = sld [smem:[#allocation2 + $0x103]]
    %s51 = sld [smem:[#allocation2 + $0x180]]
    %s52 = sld [smem:[#allocation2 + $0x181]]
    %s53 = sld [smem:[#allocation2 + $0x182]]
    %s54 = sld [smem:[#allocation2 + $0x183]]
    %s55 = sld [smem:[#allocation2 + $0x200]]
    %s56 = sld [smem:[#allocation2 + $0x201]]
    %s57 = sld [smem:[#allocation2 + $0x202]]
    %s58 = sld [smem:[#allocation2 + $0x203]]
    %s59 = sld [smem:[#allocation2 + $0x280]]
    %s60 = sld [smem:[#allocation2 + $0x281]]
    %s61 = sld [smem:[#allocation2 + $0x282]]
    %s62 = sld [smem:[#allocation2 + $0x283]]
    %s63 = sld [smem:[#allocation2 + $0x300]]
    %s64 = sld [smem:[#allocation2 + $0x301]]
    %s65 = sld [smem:[#allocation2 + $0x302]]
    %s66 = sld [smem:[#allocation2 + $0x303]]
    %s67 = smul.u32 0, 3
    %s68 = sadd.s32 0, %s67
    %s69 = smul.addr %s68, 8
    %s70 = scalar_lea.vmem [#allocation6], %s69
    %v71 = vld [vmem:[%s70] sm:$0xff]
    %v72 = vld [vmem:[%s70 + $0x18] sm:$0xff]
    %s73 = sadd.s32 0, 128
    %s74 = sshra.s32 %s73, 7
    %s75 = sand.u32 %s73, 127
    %s76 = sadd.s32 %s74, %s67
    %s77 = smul.addr %s76, 8
    %s78 = scalar_lea.vmem [#allocation6], %s77
    %v79 = vld [vmem:[%s78] sm:$0xff]
    %v80 = vld [vmem:[%s78 + $0x18] sm:$0xff]
    %s81 = sadd.s32 0, 256
    %s82 = sshra.s32 %s81, 7
    %s83 = sand.u32 %s81, 127
    %s84 = sadd.s32 %s82, %s67
    %s85 = smul.addr %s84, 8
    %s86 = scalar_lea.vmem [#allocation6], %s85
    %v87 = vld [vmem:[%s86] sm:$0xff]
    %v88 = vld [vmem:[%s86 + $0x18] sm:$0xff]
    %v89 = vmin.f32 %v79, %v71
    %v90 = vmin.f32 %v80, %v72
    %v91 = vmax.f32 %v79, %v71
    %v92 = vmax.f32 %v80, %v72
    %v93 = vmin.f32 %v87, %v71
    %v94 = vmin.f32 %v88, %v72
    %v95 = vmax.f32 %v87, %v71
    %v96 = vmax.f32 %v88, %v72
    %v97 = vmin.f32 %v87, %v79
    %v98 = vmin.f32 %v88, %v80
    %v99 = vmax.f32 %v87, %v79
    %v100 = vmax.f32 %v88, %v80
    %v101 = vmin.f32 %v97, %v71
    %v102 = vmin.f32 %v98, %v72
    %v103 = vsub.f32 %v71, %v99
    %v104 = vsub.f32 %v72, %v100
    %v105 = vmax.f32 %v103, 0.0
    %v106 = vmax.f32 %v104, 0.0
    %v107 = vstv %s39
    %v108 = vmul.f32 %v105, %v107
    %v109 = vmul.f32 %v106, %v107
    %v110 = vstv %s40
    %v111 = vmul.f32 %v105, %v110
    %v112 = vmul.f32 %v106, %v110
    %v113 = vstv %s41
    %v114 = vmul.f32 %v105, %v113
    %v115 = vmul.f32 %v106, %v113
    %v116 = vstv %s42
    %v117 = vmul.f32 %v105, %v116
    %v118 = vmul.f32 %v106, %v116
    %v119 = vsub.f32 %v79, %v95
    %v120 = vsub.f32 %v80, %v96
    %v121 = vmax.f32 %v119, 0.0
    %v122 = vmax.f32 %v120, 0.0
    %v123 = vstv %s43
    %v124 = vmul.f32 %v121, %v123
    %v125 = vmul.f32 %v122, %v123
    %v126 = vadd.f32 %v108, %v124
    %v127 = vadd.f32 %v109, %v125
    %v128 = vstv %s44
    %v129 = vmul.f32 %v121, %v128
    %v130 = vmul.f32 %v122, %v128
    %v131 = vadd.f32 %v111, %v129
    %v132 = vadd.f32 %v112, %v130
    %v133 = vstv %s45
    %v134 = vmul.f32 %v121, %v133
    %v135 = vmul.f32 %v122, %v133
    %v136 = vadd.f32 %v114, %v134
    %v137 = vadd.f32 %v115, %v135
    %v138 = vstv %s46
    %v139 = vmul.f32 %v121, %v138
    %v140 = vmul.f32 %v122, %v138
    %v141 = vadd.f32 %v117, %v139
    %v142 = vadd.f32 %v118, %v140
    %v143 = vsub.f32 %v89, %v87
    %v144 = vsub.f32 %v90, %v88
    %v145 = vmax.f32 %v143, 0.0
    %v146 = vmax.f32 %v144, 0.0
    %v147 = vstv %s47
    %v148 = vmul.f32 %v145, %v147
    %v149 = vmul.f32 %v146, %v147
    %v150 = vadd.f32 %v126, %v148
    %v151 = vadd.f32 %v127, %v149
    %v152 = vstv %s48
    %v153 = vmul.f32 %v145, %v152
    %v154 = vmul.f32 %v146, %v152
    %v155 = vadd.f32 %v131, %v153
    %v156 = vadd.f32 %v132, %v154
    %v157 = vstv %s49
    %v158 = vmul.f32 %v145, %v157
    %v159 = vmul.f32 %v146, %v157
    %v160 = vadd.f32 %v136, %v158
    %v161 = vadd.f32 %v137, %v159
    %v162 = vstv %s50
    %v163 = vmul.f32 %v145, %v162
    %v164 = vmul.f32 %v146, %v162
    %v165 = vadd.f32 %v141, %v163
    %v166 = vadd.f32 %v142, %v164
    %v167 = vsub.f32 %v87, %v91
    %v168 = vsub.f32 %v88, %v92
    %v169 = vmax.f32 %v167, 0.0
    %v170 = vmax.f32 %v168, 0.0
    %v171 = vstv %s51
    %v172 = vmul.f32 %v169, %v171
    %v173 = vmul.f32 %v170, %v171
    %v174 = vadd.f32 %v150, %v172
    %v175 = vadd.f32 %v151, %v173
    %v176 = vstv %s52
    %v177 = vmul.f32 %v169, %v176
    %v178 = vmul.f32 %v170, %v176
    %v179 = vadd.f32 %v155, %v177
    %v180 = vadd.f32 %v156, %v178
    %v181 = vstv %s53
    %v182 = vmul.f32 %v169, %v181
    %v183 = vmul.f32 %v170, %v181
    %v184 = vadd.f32 %v160, %v182
    %v185 = vadd.f32 %v161, %v183
    %v186 = vstv %s54
    %v187 = vmul.f32 %v169, %v186
    %v188 = vmul.f32 %v170, %v186
    %v189 = vadd.f32 %v165, %v187
    %v190 = vadd.f32 %v166, %v188
    %v191 = vsub.f32 %v93, %v79
    %v192 = vsub.f32 %v94, %v80
    %v193 = vmax.f32 %v191, 0.0
    %v194 = vmax.f32 %v192, 0.0
    %v195 = vstv %s55
    %v196 = vmul.f32 %v193, %v195
    %v197 = vmul.f32 %v194, %v195
    %v198 = vadd.f32 %v174, %v196
    %v199 = vadd.f32 %v175, %v197
    %v200 = vstv %s56
    %v201 = vmul.f32 %v193, %v200
    %v202 = vmul.f32 %v194, %v200
    %v203 = vadd.f32 %v179, %v201
    %v204 = vadd.f32 %v180, %v202
    %v205 = vstv %s57
    %v206 = vmul.f32 %v193, %v205
    %v207 = vmul.f32 %v194, %v205
    %v208 = vadd.f32 %v184, %v206
    %v209 = vadd.f32 %v185, %v207
    %v210 = vstv %s58
    %v211 = vmul.f32 %v193, %v210
    %v212 = vmul.f32 %v194, %v210
    %v213 = vadd.f32 %v189, %v211
    %v214 = vadd.f32 %v190, %v212
    %v215 = vsub.f32 %v97, %v71
    %v216 = vsub.f32 %v98, %v72
    %v217 = vmax.f32 %v215, 0.0
    %v218 = vmax.f32 %v216, 0.0
    %v219 = vstv %s59
    %v220 = vmul.f32 %v217, %v219
    %v221 = vmul.f32 %v218, %v219
    %v222 = vadd.f32 %v198, %v220
    %v223 = vadd.f32 %v199, %v221
    %v224 = vstv %s60
    %v225 = vmul.f32 %v217, %v224
    %v226 = vmul.f32 %v218, %v224
    %v227 = vadd.f32 %v203, %v225
    %v228 = vadd.f32 %v204, %v226
    %v229 = vstv %s61
    %v230 = vmul.f32 %v217, %v229
    %v231 = vmul.f32 %v218, %v229
    %v232 = vadd.f32 %v208, %v230
    %v233 = vadd.f32 %v209, %v231
    %v234 = vstv %s62
    %v235 = vmul.f32 %v217, %v234
    %v236 = vmul.f32 %v218, %v234
    %v237 = vadd.f32 %v213, %v235
    %v238 = vadd.f32 %v214, %v236
    %v239 = vstv %s63
    %v240 = vmul.f32 %v101, %v239
    %v241 = vmul.f32 %v102, %v239
    %v242 = vadd.f32 %v222, %v240
    %v243 = vadd.f32 %v223, %v241
    %v244 = vstv %s64
    %v245 = vmul.f32 %v101, %v244
    %v246 = vmul.f32 %v102, %v244
    %v247 = vadd.f32 %v227, %v245
    %v248 = vadd.f32 %v228, %v246
    %v249 = vstv %s65
    %v250 = vmul.f32 %v101, %v249
    %v251 = vmul.f32 %v102, %v249
    %v252 = vadd.f32 %v232, %v250
    %v253 = vadd.f32 %v233, %v251
    %v254 = vstv %s66
    %v255 = vmul.f32 %v101, %v254
    %v256 = vmul.f32 %v102, %v254
    %v257 = vadd.f32 %v237, %v255
    %v258 = vadd.f32 %v238, %v256
    %s259 = smul.u32 0, 4
    %s260 = sadd.s32 0, %s259
    %s261 = smul.addr %s260, 8
    %s262 = scalar_lea.vmem [#allocation7], %s261
    %263 = vst [vmem:[%s262] sm:$0xff] %v242
    %264 = vst [vmem:[%s262 + $0x20] sm:$0xff] %v243
    %s265 = sadd.s32 %s74, %s259
    %s266 = smul.addr %s265, 8
    %s267 = scalar_lea.vmem [#allocation7], %s266
    %268 = vst [vmem:[%s267] sm:$0xff] %v247
    %269 = vst [vmem:[%s267 + $0x20] sm:$0xff] %v248
    %s270 = sadd.s32 %s82, %s259
    %s271 = smul.addr %s270, 8
    %s272 = scalar_lea.vmem [#allocation7], %s271
    %273 = vst [vmem:[%s272] sm:$0xff] %v252
    %274 = vst [vmem:[%s272 + $0x20] sm:$0xff] %v253
    %s275 = sadd.s32 0, 384
    %s276 = sshra.s32 %s275, 7
    %s277 = sand.u32 %s275, 127
    %s278 = sadd.s32 %s276, %s259
    %s279 = smul.addr %s278, 8
    %s280 = scalar_lea.vmem [#allocation7], %s279
    %281 = vst [vmem:[%s280] sm:$0xff] %v257
    %282 = vst [vmem:[%s280 + $0x20] sm:$0xff] %v258
    // Predicated region
    $region18: #{tpu_custom_call.1} parent=1 // pred_check
      _
    $region19: #{tpu_custom_call.1} parent=1 // pred_check_branch
      %284 = sbr.rel (0) target = $region21
    $region20: #{tpu_custom_call.1} parent=1 // pred_region
      %s286 = ssub.s32 1024, 1024
      %287 = vsyncadd [#allocation4], %s286
      %s288 = sshll.u32 [#allocation7], 4
      %s289 = int_to_ptr.vmem [resolvable:$true] %s288
      %294 = dma.vmem_to_hbm [thread:$0]  %s289, 1024, %s2, [#allocation4], 512, 512, 32
    $region21: #{tpu_custom_call.1} parent=1 // pred_fallthru
      _
    // Predicated region
    $region22: #{tpu_custom_call.1} parent=1 // pred_check
      _
    $region23: #{tpu_custom_call.1} parent=1 // pred_check_branch
      %296 = sbr.rel (0) target = $region25
    $region24: #{tpu_custom_call.1} parent=1 // pred_region
      %297 = dma.done [#allocation4], 1024
    $region25: #{tpu_custom_call.1} parent=1 // pred_fallthru
      _
    %298 = vsyncpa [#allocation3], 1
    %299 = vsyncpa [#allocation4], 1
    %300 = vsyncpa [#allocation5], 1

</llo_original>
